<compile_context>
chip_gen: v5e
topology: v5e:2x2
jax: 0.10.0
libtpu: 0.0.40
codegen_flags: <defaults>
</compile_context>

<pallas_src>
import functools

import jax
import jax.numpy as jnp
from jax import lax
from jax.experimental import pallas as pl
from jax.experimental.pallas import tpu as pltpu

_LANE = 128


def _ft_bce_kernel(x_ref, t_ref, out_ref,
                   sigt_acc, sig_acc, t_acc, bce_acc,
                   *, rows, tile_rows, tiles_per_slice, n_slices, ragged):
    """Grid = (slices, row-tiles). Accumulates lane-wise partial sums in VMEM."""
    s = pl.program_id(0)
    i = pl.program_id(1)

    @pl.when(i == 0)
    def _():
        sigt_acc[...] = jnp.zeros_like(sigt_acc)
        sig_acc[...] = jnp.zeros_like(sig_acc)
        t_acc[...] = jnp.zeros_like(t_acc)
        bce_acc[...] = jnp.zeros_like(bce_acc)

    x = x_ref[...].astype(jnp.float32)      # (TR, LANE)
    t = t_ref[...].astype(jnp.float32)      # (TR, LANE) (bf16 over HBM)

    # Numerically-stable sigmoid / BCE-with-logits, sharing exp(-|x|).
    exp_neg_abs = jnp.exp(-jnp.abs(x))                          # EUP
    denom = 1.0 + exp_neg_abs
    rcp = pl.reciprocal(denom, approx=True)                     # EUP, not VALU
    sig = jnp.where(x >= 0.0, 1.0, exp_neg_abs) * rcp           # sigmoid(x)
    bce = jnp.maximum(x, 0.0) - x * t + jnp.log(denom)          # BCEWithLogits
    sig_t = sig * t

    def _accum(a, b, c, d):
        # Sublane-only per-step reduction; 128 lane partials stay resident.
        sigt_acc[...] += jnp.sum(a, axis=0, keepdims=True)
        sig_acc[...] += jnp.sum(b, axis=0, keepdims=True)
        t_acc[...] += jnp.sum(c, axis=0, keepdims=True)
        bce_acc[...] += jnp.sum(d, axis=0, keepdims=True)

    if ragged:
        # Only the single ragged last tile pays for a mask; every other tile
        # accumulates unmasked.
        is_last_block = jnp.logical_and(s == n_slices - 1,
                                        i == tiles_per_slice - 1)

        @pl.when(jnp.logical_not(is_last_block))
        def _():
            _accum(sig_t, sig, t, bce)

        @pl.when(is_last_block)
        def _():
            row0 = (s * tiles_per_slice + i) * tile_rows
            valid = row0 + lax.broadcasted_iota(jnp.int32, x.shape, 0) < rows
            _accum(jnp.where(valid, sig_t, 0.0),
                   jnp.where(valid, sig, 0.0),
                   jnp.where(valid, t, 0.0),
                   jnp.where(valid, bce, 0.0))
    else:
        _accum(sig_t, sig, t, bce)

    @pl.when(i == tiles_per_slice - 1)
    def _():
        # One unmasked lane-dense (8,128) store per slice; rows 0..3 carry the
        # four partial-sum vectors, rows 4..7 are zero.
        slab = jnp.concatenate(
            [sigt_acc[...], sig_acc[...], t_acc[...], bce_acc[...],
             jnp.zeros((4, _LANE), jnp.float32)], axis=0)
        out_ref[...] = slab.reshape(1, 8, _LANE)


def _partial_sums_jnp(x, t):
    """Plain-jnp partial sums for the tiny (<128 elem) lane tail."""
    x = x.astype(jnp.float32)
    t = t.astype(jnp.float32)
    sig = jax.nn.sigmoid(x)
    bce = jnp.maximum(x, 0.0) - x * t + jnp.log1p(jnp.exp(-jnp.abs(x)))
    return jnp.sum(sig * t), jnp.sum(sig), jnp.sum(t), jnp.sum(bce)


def _is_multi_tensorcore():
    """True on chips whose 2 TensorCores are exposed via parallel grid axes (v7x)."""
    try:
        kind = jax.devices()[0].device_kind.lower()
    except Exception:
        return False
    return ("v7" in kind) or ("7x" in kind)


def focal_tversky_bce_loss(inputs, targets, smooth=1.0,
                           alpha=0.3, beta=0.7, gamma=0.75,
                           tile_rows=2048, num_slices=None):
    """Pallas implementation of FocalTversky_BCELoss.forward (scalar loss)."""
    total = inputs.size
    x_flat = inputs.reshape(-1)
    t_flat = targets.reshape(-1)

    # Narrow targets over HBM: binary segmentation masks are exact in bf16 and
    # this cuts memory traffic ~25-37% on HBM-bound v5e/v6e.
    if t_flat.dtype != jnp.bfloat16:
        t_flat = t_flat.astype(jnp.bfloat16)

    rows = total // _LANE
    tail = total - rows * _LANE

    # Lane tail (<128 elems) and degenerate tiny inputs: plain jnp, no jnp.pad copy.
    if tail or rows == 0:
        tp_s, sig_s, t_s, bce_s = _partial_sums_jnp(x_flat[rows * _LANE:],
                                                    t_flat[rows * _LANE:])
    else:
        tp_s = sig_s = t_s = bce_s = jnp.float32(0.0)

    if rows > 0:
        x2 = (x_flat[:rows * _LANE] if tail else x_flat).reshape(rows, _LANE)
        t2 = (t_flat[:rows * _LANE] if tail else t_flat).reshape(rows, _LANE)

        if rows <= tile_rows:
            tr = rows                              # single full-array block
        else:
            tr = max(16, (tile_rows // 16) * 16)   # multiple of 16 (bf16 packing)
        total_tiles = pl.cdiv(rows, tr)
        ragged = (rows % tr) != 0

        desired = num_slices if num_slices is not None else (
            2 if _is_multi_tensorcore() else 1)
        desired = max(1, min(int(desired), total_tiles))
        # Exact coverage (no clamped duplicate blocks): slices must divide tiles.
        n_slices = desired if total_tiles % desired == 0 else 1
        tiles_per_slice = total_tiles // n_slices

        kernel = functools.partial(
            _ft_bce_kernel,
            rows=rows, tile_rows=tr, tiles_per_slice=tiles_per_slice,
            n_slices=n_slices, ragged=ragged)

        def in_map(s, i):
            return (s * tiles_per_slice + i, 0)

        out = pl.pallas_call(
            kernel,
            out_shape=jax.ShapeDtypeStruct((n_slices, 8, _LANE), jnp.float32),
            grid_spec=pltpu.PrefetchScalarGridSpec(
                num_scalar_prefetch=0,
                grid=(n_slices, tiles_per_slice),
                in_specs=[
                    pl.BlockSpec((tr, _LANE), in_map),
                    pl.BlockSpec((tr, _LANE), in_map),
                ],
                out_specs=pl.BlockSpec((1, 8, _LANE), lambda s, i: (s, 0, 0)),
                scratch_shapes=[pltpu.VMEM((1, _LANE), jnp.float32)] * 4,
            ),
            compiler_params=pltpu.CompilerParams(
                dimension_semantics=("parallel", "arbitrary"),
                vmem_limit_bytes=32 * 1024 * 1024),
            cost_estimate=pl.CostEstimate(
                flops=12 * rows * _LANE,
                transcendentals=3 * rows * _LANE,
                bytes_accessed=rows * _LANE * (x2.dtype.itemsize
                                               + t2.dtype.itemsize)
                               + n_slices * 8 * _LANE * 4),
        )(x2, t2)

        partials = jnp.sum(out, axis=(0, 2))       # (8,) lane+slice reduce
        tp = partials[0] + tp_s
        sig_sum = partials[1] + sig_s
        t_sum = partials[2] + t_s
        bce_sum = partials[3] + bce_s
    else:
        tp, sig_sum, t_sum, bce_sum = tp_s, sig_s, t_s, bce_s

    # FP / FN recovered algebraically (saves per-element work in the kernel).
    fp = sig_sum - tp
    fn = t_sum - tp
    tversky = (tp + smooth) / (tp + alpha * fp + beta * fn + smooth)
    # 1 - Tversky >= 0 mathematically; clamp guards fp rounding before pow.
    focal = jnp.power(jnp.maximum(1.0 - tversky, 0.0), gamma)
    bce_mean = bce_sum / jnp.float32(total)
    return focal + bce_mean


def _reference(inputs, targets, smooth=1.0, alpha=0.3, beta=0.7, gamma=0.75):
    x = inputs.reshape(-1).astype(jnp.float32)
    t = targets.reshape(-1).astype(jnp.float32)
    sig = jax.nn.sigmoid(x)
    tp = jnp.sum(sig * t)
    fp = jnp.sum((1.0 - t) * sig)
    fn = jnp.sum(t * (1.0 - sig))
    tversky = (tp + smooth) / (tp + alpha * fp + beta * fn + smooth)
    bce = jnp.mean(jnp.maximum(x, 0.0) - x * t + jnp.log1p(jnp.exp(-jnp.abs(x))))
    return (1.0 - tversky) ** gamma + bce


if __name__ == "__main__":
    key = jax.random.PRNGKey(0)
    k1, k2 = jax.random.split(key)

    # Binary segmentation shapes implied by the module (sigmoid + BCEWithLogits).
    N, C, H, W = 2, 1, 16, 16
    logits = jax.random.normal(k1, (N, C, H, W), dtype=jnp.float32)
    targets = jax.random.bernoulli(k2, 0.5, (N, C, H, W)).astype(jnp.float32)

    loss = jax.block_until_ready(focal_tversky_bce_loss(logits, targets))
    ref = _reference(logits, targets)
    # Tolerance accounts for the approx-reciprocal sigmoid (loss-level only).
    assert jnp.allclose(loss, ref, rtol=5e-3, atol=5e-3), (loss, ref)

    # Extra coverage: non-lane-aligned size + multi-tile grid with ragged last tile.
    k3, k4 = jax.random.split(k2)
    logits2 = jax.random.normal(k3, (2, 1, 41, 40), dtype=jnp.float32)
    targets2 = jax.random.bernoulli(k4, 0.5, (2, 1, 41, 40)).astype(jnp.float32)
    loss2 = jax.block_until_ready(
        focal_tversky_bce_loss(logits2, targets2, tile_rows=16))
    ref2 = _reference(logits2, targets2)
    assert jnp.allclose(loss2, ref2, rtol=5e-3, atol=5e-3), (loss2, ref2)

    print("KERNEL_OK")
</pallas_src>

<mosaic_0001>
module attributes {stable_mosaic.version = 11 : i64} {
  func.func @_ft_bce_kernel(%arg0: i32, %arg1: i32, %arg2: memref<4x128xf32, #tpu.memory_space<vmem>>, %arg3: memref<4x128xbf16, #tpu.memory_space<vmem>>, %arg4: memref<1x8x128xf32, #tpu.memory_space<vmem>>, %arg5: memref<1x128xf32, #tpu.memory_space<vmem>>, %arg6: memref<1x128xf32, #tpu.memory_space<vmem>>, %arg7: memref<1x128xf32, #tpu.memory_space<vmem>>, %arg8: memref<1x128xf32, #tpu.memory_space<vmem>>) attributes {dimension_semantics = [#tpu.dimension_semantics<parallel>, #tpu.dimension_semantics<arbitrary>], iteration_bounds = array<i64: 1, 1>, scalar_prefetch = 0 : i64, scratch_operands = 4 : i64, tpu.core_type = #tpu.core_type<tc>, window_params = [{transform_indices = @transform_0, window_bounds = array<i64: 4, 128>}, {transform_indices = @transform_1, window_bounds = array<i64: 4, 128>}, {transform_indices = @transform_2, window_bounds = array<i64: 1, 8, 128>}]} {
    %c0_i32 = arith.constant 0 : i32
    %0 = arith.cmpi eq, %arg1, %c0_i32 : i32
    %1 = arith.extui %0 : i1 to i32
    %c0_i32_0 = arith.constant 0 : i32
    %2 = arith.cmpi ne, %1, %c0_i32_0 : i32
    scf.if %2 {
      %cst_30 = arith.constant 0.000000e+00 : f32
      %48 = vector.broadcast %cst_30 : f32 to vector<1x128xf32>
      %c0_31 = arith.constant 0 : index
      %c0_32 = arith.constant 0 : index
      %49 = vector.load %arg5[%c0_31, %c0_32] : memref<1x128xf32, #tpu.memory_space<vmem>>, vector<1x128xf32>
      tpu.vector_store %arg5[%c0_31, %c0_32], %48 {strides = array<i32>} : memref<1x128xf32, #tpu.memory_space<vmem>>, vector<1x128xf32>,
      %cst_33 = arith.constant 0.000000e+00 : f32
      %50 = vector.broadcast %cst_33 : f32 to vector<1x128xf32>
      %c0_34 = arith.constant 0 : index
      %c0_35 = arith.constant 0 : index
      %51 = vector.load %arg6[%c0_34, %c0_35] : memref<1x128xf32, #tpu.memory_space<vmem>>, vector<1x128xf32>
      tpu.vector_store %arg6[%c0_34, %c0_35], %50 {strides = array<i32>} : memref<1x128xf32, #tpu.memory_space<vmem>>, vector<1x128xf32>,
      %cst_36 = arith.constant 0.000000e+00 : f32
      %52 = vector.broadcast %cst_36 : f32 to vector<1x128xf32>
      %c0_37 = arith.constant 0 : index
      %c0_38 = arith.constant 0 : index
      %53 = vector.load %arg7[%c0_37, %c0_38] : memref<1x128xf32, #tpu.memory_space<vmem>>, vector<1x128xf32>
      tpu.vector_store %arg7[%c0_37, %c0_38], %52 {strides = array<i32>} : memref<1x128xf32, #tpu.memory_space<vmem>>, vector<1x128xf32>,
      %cst_39 = arith.constant 0.000000e+00 : f32
      %54 = vector.broadcast %cst_39 : f32 to vector<1x128xf32>
      %c0_40 = arith.constant 0 : index
      %c0_41 = arith.constant 0 : index
      %55 = vector.load %arg8[%c0_40, %c0_41] : memref<1x128xf32, #tpu.memory_space<vmem>>, vector<1x128xf32>
      tpu.vector_store %arg8[%c0_40, %c0_41], %54 {strides = array<i32>} : memref<1x128xf32, #tpu.memory_space<vmem>>, vector<1x128xf32>,
    } else {
    }
    %c0 = arith.constant 0 : index
    %c0_1 = arith.constant 0 : index
    %3 = vector.load %arg2[%c0, %c0_1] : memref<4x128xf32, #tpu.memory_space<vmem>>, vector<4x128xf32>
    %c0_2 = arith.constant 0 : index
    %c0_3 = arith.constant 0 : index
    %4 = vector.load %arg3[%c0_2, %c0_3] : memref<4x128xbf16, #tpu.memory_space<vmem>>, vector<4x128xbf16>
    %5 = arith.extf %4 : vector<4x128xbf16> to vector<4x128xf32>
    %6 = math.absf %3 : vector<4x128xf32>
    %cst = arith.constant 0.000000e+00 : f32
    %7 = vector.broadcast %cst : f32 to vector<4x128xf32>
    %8 = arith.subf %7, %6 : vector<4x128xf32>
    %9 = math.exp %8 : vector<4x128xf32>
    %cst_4 = arith.constant 1.000000e+00 : f32
    %10 = vector.broadcast %cst_4 : f32 to vector<4x128xf32>
    %11 = arith.addf %10, %9 : vector<4x128xf32>
    %12 = tpu.reciprocal %11 {approx = true} : vector<4x128xf32> -> vector<4x128xf32>
    %cst_5 = arith.constant 0.000000e+00 : f32
    %13 = vector.broadcast %cst_5 : f32 to vector<4x128xf32>
    %14 = arith.cmpf oge, %3, %13 : vector<4x128xf32>
    %cst_6 = arith.constant 1.000000e+00 : f32
    %15 = vector.broadcast %cst_6 : f32 to vector<4x128xf32>
    %16 = arith.select %14, %15, %9 : vector<4x128xi1>, vector<4x128xf32>
    %17 = arith.mulf %16, %12 : vector<4x128xf32>
    %cst_7 = arith.constant 0.000000e+00 : f32
    %18 = vector.broadcast %cst_7 : f32 to vector<4x128xf32>
    %19 = arith.maximumf %3, %18 : vector<4x128xf32>
    %20 = arith.mulf %3, %5 : vector<4x128xf32>
    %21 = arith.subf %19, %20 : vector<4x128xf32>
    %22 = math.log %11 : vector<4x128xf32>
    %23 = arith.addf %21, %22 : vector<4x128xf32>
    %24 = arith.mulf %17, %5 : vector<4x128xf32>
    %c0_8 = arith.constant 0 : index
    %c0_9 = arith.constant 0 : index
    %25 = vector.load %arg5[%c0_8, %c0_9] : memref<1x128xf32, #tpu.memory_space<vmem>>, vector<1x128xf32>
    %cst_10 = arith.constant dense<0.000000e+00> : vector<128xf32>
    %26 = vector.multi_reduction <add>, %24, %cst_10 [0] : vector<4x128xf32> to vector<128xf32>
    %27 = vector.shape_cast %26 : vector<128xf32> to vector<1x128xf32>
    %28 = arith.addf %25, %27 : vector<1x128xf32>
    %c0_11 = arith.constant 0 : index
    %c0_12 = arith.constant 0 : index
    %29 = vector.load %arg5[%c0_11, %c0_12] : memref<1x128xf32, #tpu.memory_space<vmem>>, vector<1x128xf32>
    tpu.vector_store %arg5[%c0_11, %c0_12], %28 {strides = array<i32>} : memref<1x128xf32, #tpu.memory_space<vmem>>, vector<1x128xf32>,
    %c0_13 = arith.constant 0 : index
    %c0_14 = arith.constant 0 : index
    %30 = vector.load %arg6[%c0_13, %c0_14] : memref<1x128xf32, #tpu.memory_space<vmem>>, vector<1x128xf32>
    %cst_15 = arith.constant dense<0.000000e+00> : vector<128xf32>
    %31 = vector.multi_reduction <add>, %17, %cst_15 [0] : vector<4x128xf32> to vector<128xf32>
    %32 = vector.shape_cast %31 : vector<128xf32> to vector<1x128xf32>
    %33 = arith.addf %30, %32 : vector<1x128xf32>
    %c0_16 = arith.constant 0 : index
    %c0_17 = arith.constant 0 : index
    %34 = vector.load %arg6[%c0_16, %c0_17] : memref<1x128xf32, #tpu.memory_space<vmem>>, vector<1x128xf32>
    tpu.vector_store %arg6[%c0_16, %c0_17], %33 {strides = array<i32>} : memref<1x128xf32, #tpu.memory_space<vmem>>, vector<1x128xf32>,
    %c0_18 = arith.constant 0 : index
    %c0_19 = arith.constant 0 : index
    %35 = vector.load %arg7[%c0_18, %c0_19] : memref<1x128xf32, #tpu.memory_space<vmem>>, vector<1x128xf32>
    %cst_20 = arith.constant dense<0.000000e+00> : vector<128xf32>
    %36 = vector.multi_reduction <add>, %5, %cst_20 [0] : vector<4x128xf32> to vector<128xf32>
    %37 = vector.shape_cast %36 : vector<128xf32> to vector<1x128xf32>
    %38 = arith.addf %35, %37 : vector<1x128xf32>
    %c0_21 = arith.constant 0 : index
    %c0_22 = arith.constant 0 : index
    %39 = vector.load %arg7[%c0_21, %c0_22] : memref<1x128xf32, #tpu.memory_space<vmem>>, vector<1x128xf32>
    tpu.vector_store %arg7[%c0_21, %c0_22], %38 {strides = array<i32>} : memref<1x128xf32, #tpu.memory_space<vmem>>, vector<1x128xf32>,
    %c0_23 = arith.constant 0 : index
    %c0_24 = arith.constant 0 : index
    %40 = vector.load %arg8[%c0_23, %c0_24] : memref<1x128xf32, #tpu.memory_space<vmem>>, vector<1x128xf32>
    %cst_25 = arith.constant dense<0.000000e+00> : vector<128xf32>
    %41 = vector.multi_reduction <add>, %23, %cst_25 [0] : vector<4x128xf32> to vector<128xf32>
    %42 = vector.shape_cast %41 : vector<128xf32> to vector<1x128xf32>
    %43 = arith.addf %40, %42 : vector<1x128xf32>
    %c0_26 = arith.constant 0 : index
    %c0_27 = arith.constant 0 : index
    %44 = vector.load %arg8[%c0_26, %c0_27] : memref<1x128xf32, #tpu.memory_space<vmem>>, vector<1x128xf32>
    tpu.vector_store %arg8[%c0_26, %c0_27], %43 {strides = array<i32>} : memref<1x128xf32, #tpu.memory_space<vmem>>, vector<1x128xf32>,
    %c0_i32_28 = arith.constant 0 : i32
    %45 = arith.cmpi eq, %arg1, %c0_i32_28 : i32
    %46 = arith.extui %45 : i1 to i32
    %c0_i32_29 = arith.constant 0 : i32
    %47 = arith.cmpi ne, %46, %c0_i32_29 : i32
    scf.if %47 {
      %c0_30 = arith.constant 0 : index
      %c0_31 = arith.constant 0 : index
      %48 = vector.load %arg5[%c0_30, %c0_31] : memref<1x128xf32, #tpu.memory_space<vmem>>, vector<1x128xf32>
      %c0_32 = arith.constant 0 : index
      %c0_33 = arith.constant 0 : index
      %49 = vector.load %arg6[%c0_32, %c0_33] : memref<1x128xf32, #tpu.memory_space<vmem>>, vector<1x128xf32>
      %c0_34 = arith.constant 0 : index
      %c0_35 = arith.constant 0 : index
      %50 = vector.load %arg7[%c0_34, %c0_35] : memref<1x128xf32, #tpu.memory_space<vmem>>, vector<1x128xf32>
      %c0_36 = arith.constant 0 : index
      %c0_37 = arith.constant 0 : index
      %51 = vector.load %arg8[%c0_36, %c0_37] : memref<1x128xf32, #tpu.memory_space<vmem>>, vector<1x128xf32>
      %cst_38 = arith.constant 0.000000e+00 : f32
      %52 = vector.broadcast %cst_38 : f32 to vector<4x128xf32>
      %53 = tpu.concatenate %48, %49, %50, %51, %52 in 0 : vector<1x128xf32>, vector<1x128xf32>, vector<1x128xf32>, vector<1x128xf32>, vector<4x128xf32> -> vector<8x128xf32>
      %54 = vector.shape_cast %53 : vector<8x128xf32> to vector<1x8x128xf32>
      %c0_39 = arith.constant 0 : index
      %c0_40 = arith.constant 0 : index
      %c0_41 = arith.constant 0 : index
      %55 = vector.load %arg4[%c0_39, %c0_40, %c0_41] : memref<1x8x128xf32, #tpu.memory_space<vmem>>, vector<1x8x128xf32>
      tpu.vector_store %arg4[%c0_39, %c0_40, %c0_41], %54 {strides = array<i32>} : memref<1x8x128xf32, #tpu.memory_space<vmem>>, vector<1x8x128xf32>,
    } else {
    }
    return
  }
  func.func @transform_0(%arg0: i32, %arg1: i32) -> (i32, i32) {
    %c1_i32 = arith.constant 1 : i32
    %0 = arith.muli %arg0, %c1_i32 : i32
    %1 = arith.addi %0, %arg1 : i32
    %c0_i32 = arith.constant 0 : i32
    %c0_i32_0 = arith.constant 0 : i32
    return %1, %c0_i32 : i32, i32
  }
  func.func @transform_1(%arg0: i32, %arg1: i32) -> (i32, i32) {
    %c1_i32 = arith.constant 1 : i32
    %0 = arith.muli %arg0, %c1_i32 : i32
    %1 = arith.addi %0, %arg1 : i32
    %c0_i32 = arith.constant 0 : i32
    %c0_i32_0 = arith.constant 0 : i32
    return %1, %c0_i32 : i32, i32
  }
  func.func @transform_2(%arg0: i32, %arg1: i32) -> (i32, i32, i32) {
    %c0_i32 = arith.constant 0 : i32
    %c0_i32_0 = arith.constant 0 : i32
    %c0_i32_1 = arith.constant 0 : i32
    return %arg0, %c0_i32, %c0_i32_0 : i32, i32, i32
  }
}

</mosaic_0001>

<llo_original>
// kernel: tpu_custom_call.1
$region0: #{tpu_custom_call.1}
  #allocation0 [shape = 'u32[]', space=smem, size = 0x4, offset = 0x4, fixed_abs, tag = 'smem constant byte address 0x4 - core index']
  #allocation1 [shape = 'u32[72,128]{1,0:T(1,128)}', space=vmem, size = 0x9000, scoped, tag = 'internal scratch']
  #allocation2 [shape = 'f32[1,128]{1,0:T(1,128)}', space=vmem, size = 0x200, scoped, tag = 'scratch operand']
  #allocation3 [shape = 'f32[1,128]{1,0:T(1,128)}', space=vmem, size = 0x200, scoped, tag = 'scratch operand']
  #allocation4 [shape = 'f32[1,128]{1,0:T(1,128)}', space=vmem, size = 0x200, scoped, tag = 'scratch operand']
  #allocation5 [shape = 'f32[1,128]{1,0:T(1,128)}', space=vmem, size = 0x200, scoped, tag = 'scratch operand']
  %s0 = inlined_call_operand.hbm [shape: f32[4,128], index: 0, kind: input, shape index: {}]
  %s1 = inlined_call_operand.hbm [shape: bf16[4,128], index: 1, kind: input, shape index: {}]
  %s2 = inlined_call_operand.hbm [shape: f32[1,8,128], index: 2, kind: output, shape index: {}]
  %s3 = sld [smem:[#allocation0]]
  $region34: #{tpu_custom_call.1} parent=0
    _
  %s5 = ssub.s32 1, %s3
  %s6 = scalar_select 0, %s5, %s3
  $region1: #{tpu_custom_call.1} parent=0
    #allocation6 [shape = 'u8[2048]{0}', space=vmem, size = 0x800, scoped, tag = 'input window, operand 0, single buffered']
    #allocation7 [shape = 's32[1]{0}', space=sflag, size = 0x4, scoped, tag = 'scoped memory for tpu_custom_call.1']
    #allocation8 [shape = 's32[1]{0}', space=sflag, size = 0x4, scoped, tag = 'scoped memory for tpu_custom_call.1']
    #allocation9 [shape = 'u8[1024]{0}', space=vmem, size = 0x400, scoped, tag = 'input window, operand 1, single buffered']
    #allocation10 [shape = 's32[1]{0}', space=sflag, size = 0x4, scoped, tag = 'scoped memory for tpu_custom_call.1']
    #allocation11 [shape = 'u8[4096]{0}', space=vmem, size = 0x1000, scoped, tag = 'output window, operand 0, single buffered']
    %7 = vsyncpa [#allocation7], 0
    %8 = vsyncpa [#allocation10], 0
    %9 = vsyncpa [#allocation8], 0
    // Predicated region
    $region2: #{tpu_custom_call.1} parent=1 // pred_check
      _
    $region3: #{tpu_custom_call.1} parent=1 // pred_check_branch
      %11 = sbr.rel (0) target = $region5
    $region4: #{tpu_custom_call.1} parent=1 // pred_region
      %s12 = sadd.s32 0, 0
      %14 = vsyncadd [#allocation7], 0
      %s15 = smul.addr %s12, 4
      %s16 = scalar_lea.hbm %s0, %s15
      %s18 = sshll.u32 %s16, 4
      %s19 = int_to_ptr.hbm [resolvable:$true] %s18
      %s20 = sshll.u32 [#allocation6], 4
      %s21 = int_to_ptr.vmem [resolvable:$true] %s20
      %23 = dma.hbm_to_vmem [thread:$0]  %s19, 64, %s21, [#allocation7]
    $region5: #{tpu_custom_call.1} parent=1 // pred_fallthru
      _
    // Predicated region
    $region6: #{tpu_custom_call.1} parent=1 // pred_check
      _
    $region7: #{tpu_custom_call.1} parent=1 // pred_check_branch
      %25 = sbr.rel (0) target = $region9
    $region8: #{tpu_custom_call.1} parent=1 // pred_region
      %s26 = sadd.s32 0, 0
      %28 = vsyncadd [#allocation10], 0
      %s29 = smul.addr %s26, 2
      %s30 = scalar_lea.hbm %s1, %s29
      %s32 = sshll.u32 %s30, 4
      %s33 = int_to_ptr.hbm [resolvable:$true] %s32
      %s34 = sshll.u32 [#allocation9], 4
      %s35 = int_to_ptr.vmem [resolvable:$true] %s34
      %37 = dma.hbm_to_vmem [thread:$0]  %s33, 32, %s35, [#allocation10]
    $region9: #{tpu_custom_call.1} parent=1 // pred_fallthru
      _
    // Predicated region
    $region10: #{tpu_custom_call.1} parent=1 // pred_check
      _
    $region11: #{tpu_custom_call.1} parent=1 // pred_check_branch
      %39 = sbr.rel (0) target = $region13
    $region12: #{tpu_custom_call.1} parent=1 // pred_region
      %41 = dma.done [#allocation7], 64
    $region13: #{tpu_custom_call.1} parent=1 // pred_fallthru
      _
    // Predicated region
    $region14: #{tpu_custom_call.1} parent=1 // pred_check
      _
    $region15: #{tpu_custom_call.1} parent=1 // pred_check_branch
      %43 = sbr.rel (0) target = $region17
    $region16: #{tpu_custom_call.1} parent=1 // pred_region
      %45 = dma.done [#allocation10], 32
    $region17: #{tpu_custom_call.1} parent=1 // pred_fallthru
      _
    %s46 = sadd.s32 0, 0
    %s47 = sadd.s32 0, 0
    %p48 = scmp.eq.s32.totalorder 0, 0
    // Predicated region
    $region18: #{tpu_custom_call.1} parent=1 // pred_check
      %p49 = pneg %p48
    $region19: #{tpu_custom_call.1} parent=1 // pred_check_branch
      %51 = sbr.rel (%p49) target = $region21
    $region20: #{tpu_custom_call.1} parent=1 // pred_region
      %52 = vst [vmem:[#allocation2] sm:$0x1] 0.0
      %53 = vst [vmem:[#allocation3] sm:$0x1] 0.0
      %54 = vst [vmem:[#allocation4] sm:$0x1] 0.0
      %55 = vst [vmem:[#allocation5] sm:$0x1] 0.0
    $region21: #{tpu_custom_call.1} parent=1 // pred_fallthru
      _
    %v56 = vld [vmem:[#allocation6] sm:$0xf]
    %v57 = vld [vmem:[#allocation9] sm:$0x3]
    %v58 = vunpack.c.l.bf16 %v57
    %v59 = vand.u32 2147483647, %v56
    %v60 = vsub.f32 0.0, %v59
    %v61 = vmul.f32 %v60, 1.442695
    %v62 = vpow.pop %v61
    %v63 = vadd.f32 %v62, 1.0
    %v64 = vrcp.pop %v63
    %vm65 = vcmp.ge.f32.partialorder %v56, 0.0
    %v66 = vsel %vm65, 1.0, %v62
    %v67 = vmul.f32 %v66, %v64
    %v68 = vmax.f32 %v56, 0.0
    %v69 = vmul.f32 %v56, %v58
    %v70 = vsub.f32 %v68, %v69
    %v71 = vlog2.pop %v63
    %v72 = vmul.f32 %v71, 0.6931472
    %v73 = vadd.f32 %v70, %v72
    %v74 = vmul.f32 %v67, %v58
    %v75 = vld [vmem:[#allocation2] sm:$0x1]
    %vm76 = vcmask 1043456
    %v77 = vsel %vm76, %v74, 0.0
    %v78 = vrot.slane %v77, 4
    %v79 = vadd.f32 %v77, %v78
    %v80 = vrot.slane %v79, 2
    %v81 = vadd.f32 %v79, %v80
    %v82 = vrot.slane %v81, 1
    %v83 = vadd.f32 %v81, %v82
    %v84 = vadd.f32 %v75, %v83
    %85 = vst [vmem:[#allocation2] sm:$0x1] %v84
    %v86 = vld [vmem:[#allocation3] sm:$0x1]
    %v87 = vsel %vm76, %v67, 0.0
    %v88 = vrot.slane %v87, 4
    %v89 = vadd.f32 %v87, %v88
    %v90 = vrot.slane %v89, 2
    %v91 = vadd.f32 %v89, %v90
    %v92 = vrot.slane %v91, 1
    %v93 = vadd.f32 %v91, %v92
    %v94 = vadd.f32 %v86, %v93
    %95 = vst [vmem:[#allocation3] sm:$0x1] %v94
    %v96 = vld [vmem:[#allocation4] sm:$0x1]
    %v97 = vsel %vm76, %v58, 0.0
    %v98 = vrot.slane %v97, 4
    %v99 = vadd.f32 %v97, %v98
    %v100 = vrot.slane %v99, 2
    %v101 = vadd.f32 %v99, %v100
    %v102 = vrot.slane %v101, 1
    %v103 = vadd.f32 %v101, %v102
    %v104 = vadd.f32 %v96, %v103
    %105 = vst [vmem:[#allocation4] sm:$0x1] %v104
    %v106 = vld [vmem:[#allocation5] sm:$0x1]
    %v107 = vsel %vm76, %v73, 0.0
    %v108 = vrot.slane %v107, 4
    %v109 = vadd.f32 %v107, %v108
    %v110 = vrot.slane %v109, 2
    %v111 = vadd.f32 %v109, %v110
    %v112 = vrot.slane %v111, 1
    %v113 = vadd.f32 %v111, %v112
    %v114 = vadd.f32 %v106, %v113
    %115 = vst [vmem:[#allocation5] sm:$0x1] %v114
    // Predicated region
    $region22: #{tpu_custom_call.1} parent=1 // pred_check
      %p116 = pneg %p48
    $region23: #{tpu_custom_call.1} parent=1 // pred_check_branch
      %118 = sbr.rel (%p116) target = $region25
    $region24: #{tpu_custom_call.1} parent=1 // pred_region
      %v119 = vld [vmem:[#allocation2] sm:$0x1]
      %v120 = vld [vmem:[#allocation3] sm:$0x1]
      %v121 = vld [vmem:[#allocation4] sm:$0x1]
      %v122 = vld [vmem:[#allocation5] sm:$0x1]
      %v124 = vperm.slane %v120, 0
      %v127 = vperm.slane %v121, 0
      %v130 = vperm.slane %v122, 0
      %vm132 = vcmask 1040384
      %v133 = vsel %vm132, %v119, %v124
      %vm134 = vcmask 1041408
      %v135 = vsel %vm134, %v133, %v127
      %vm136 = vcmask 1042432
      %v137 = vsel %vm136, %v135, %v130
      %v138 = vsel %vm76, %v137, 0.0
      %139 = vst [vmem:[#allocation11] sm:$0xff] %v138
    $region25: #{tpu_custom_call.1} parent=1 // pred_fallthru
      _
    // Predicated region
    $region26: #{tpu_custom_call.1} parent=1 // pred_check
      _
    $region27: #{tpu_custom_call.1} parent=1 // pred_check_branch
      %141 = sbr.rel (0) target = $region29
    $region28: #{tpu_custom_call.1} parent=1 // pred_region
      %143 = vsyncadd [#allocation8], 0
      %s145 = sshll.u32 [#allocation11], 4
      %s146 = int_to_ptr.vmem [resolvable:$true] %s145
      %s147 = sshll.u32 %s2, 4
      %s148 = int_to_ptr.hbm [resolvable:$true] %s147
      %150 = dma.vmem_to_hbm [thread:$0]  %s146, 128, %s148, [#allocation8]
    $region29: #{tpu_custom_call.1} parent=1 // pred_fallthru
      _
    // Predicated region
    $region30: #{tpu_custom_call.1} parent=1 // pred_check
      _
    $region31: #{tpu_custom_call.1} parent=1 // pred_check_branch
      %152 = sbr.rel (0) target = $region33
    $region32: #{tpu_custom_call.1} parent=1 // pred_region
      %154 = dma.done [#allocation8], 128
    $region33: #{tpu_custom_call.1} parent=1 // pred_fallthru
      _
    %155 = vsyncpa [#allocation7], 1
    %156 = vsyncpa [#allocation10], 1
    %157 = vsyncpa [#allocation8], 1

</llo_original>
